<compile_context>
chip_gen: v5e
topology: v5e:2x2
jax: 0.10.0
libtpu: 0.0.40
codegen_flags: <defaults>
</compile_context>

<pallas_src>
import jax
import jax.numpy as jnp
from jax.experimental import pallas as pl
from jax.experimental.pallas import tpu as pltpu

# Fast-path VMEM budget: whole-array x + out + params must fit well inside v5e's
# 16 MiB scoped-VMEM default (no compiler_params needed when under this budget).
_FAST_PATH_VMEM_BUDGET = 8 * 1024 * 1024


def shallow_network_kernel(x_ref, w1_ref, b1_ref, w2_ref, b2_ref, o_ref):
    # Hidden layer: Linear + ReLU  (MXU matmul with f32 accumulate, VPU elementwise).
    h = jnp.dot(x_ref[...], w1_ref[...], preferred_element_type=jnp.float32)
    h = jnp.maximum(h + b1_ref[...], 0.0)

    # Output layer: Linear + Sigmoid (sigmoid -> EUP transcendental).
    y = jnp.dot(h, w2_ref[...], preferred_element_type=jnp.float32)
    y = jax.nn.sigmoid(y + b2_ref[...])

    o_ref[...] = y.astype(o_ref.dtype)


def _round_up(n, m):
    return ((n + m - 1) // m) * m


def shallow_network_forward(x, w1, b1, w2, b2, *, batch_tile=1024):
    B, I = x.shape
    H = w1.shape[1]
    O = w2.shape[1]
    out_dtype = x.dtype

    itemsize = jnp.dtype(x.dtype).itemsize
    param_bytes = (I * H + H + H * O + O) * 4
    fast_bytes = B * I * itemsize + B * O * jnp.dtype(out_dtype).itemsize + param_bytes

    if B <= batch_tile and fast_bytes <= _FAST_PATH_VMEM_BUDGET:
        # Tiny-batch fast path: no grid, no pipeline. Whole arrays live in VMEM and
        # the output is written at its natural (B, O) shape -- a single masked vst is
        # far cheaper than a follow-up slice kernel would be.
        return pl.pallas_call(
            shallow_network_kernel,
            out_shape=jax.ShapeDtypeStruct((B, O), out_dtype),
            in_specs=[pl.BlockSpec(memory_space=pltpu.MemorySpace.VMEM)] * 5,
            out_specs=pl.BlockSpec(memory_space=pltpu.MemorySpace.VMEM),
        )(x, w1, b1, w2, b2)

    # Streaming path: batch axis tiled, weights/biases VMEM-resident (constant index
    # maps -> DMA'd once). Ragged last tile handled by the grid (writeback masked),
    # so no padded copy of x is ever materialized.
    tm = min(batch_tile, _round_up(B, 8))
    grid = (pl.cdiv(B, tm),)

    # Per-step VMEM: ~2*(tm*I + tm*O)*4 B + params (<0.2 MiB at tm=1024, I=16) --
    # far below even the 32 MiB scoped default, so no vmem_limit_bytes needed here.
    return pl.pallas_call(
        shallow_network_kernel,
        out_shape=jax.ShapeDtypeStruct((B, O), out_dtype),
        grid=grid,
        in_specs=[
            pl.BlockSpec((tm, I), lambda i: (i, 0)),   # x : blocked over batch
            pl.BlockSpec((I, H), lambda i: (0, 0)),    # w1: resident
            pl.BlockSpec((1, H), lambda i: (0, 0)),    # b1: resident
            pl.BlockSpec((H, O), lambda i: (0, 0)),    # w2: resident
            pl.BlockSpec((1, O), lambda i: (0, 0)),    # b2: resident
        ],
        out_specs=pl.BlockSpec((tm, O), lambda i: (i, 0)),
        compiler_params=pltpu.CompilerParams(
            # On v7x, switch to pltpu.CORE_PARALLEL (or pl.core_map) to shard batch
            # tiles across the two TensorCores and size batch_tile so each core gets
            # >= 4-8 grid steps.
            dimension_semantics=("parallel",),
        ),
    )(x, w1, b1, w2, b2)


def init_params(key, input_size, num_hidden_units, output_size):
    """Deterministic init mimicking PyTorch nn.Linear default U[-1/sqrt(fan_in), ...]."""
    k1, k2, k3, k4 = jax.random.split(key, 4)
    bound1 = 1.0 / jnp.sqrt(jnp.float32(input_size))
    bound2 = 1.0 / jnp.sqrt(jnp.float32(num_hidden_units))
    # Stored as (in, out): kernel computes x @ W (transpose of PyTorch's (out, in)).
    w1 = jax.random.uniform(k1, (input_size, num_hidden_units), jnp.float32, -bound1, bound1)
    b1 = jax.random.uniform(k2, (1, num_hidden_units), jnp.float32, -bound1, bound1)
    w2 = jax.random.uniform(k3, (num_hidden_units, output_size), jnp.float32, -bound2, bound2)
    b2 = jax.random.uniform(k4, (1, output_size), jnp.float32, -bound2, bound2)
    return w1, b1, w2, b2


def _reference(x, w1, b1, w2, b2):
    # Full-f32 reference (XLA's default TPU matmul is bf16-pass; force HIGHEST here).
    hp = jax.lax.Precision.HIGHEST
    h = jnp.maximum(jnp.dot(x, w1, precision=hp) + b1, 0.0)
    return jax.nn.sigmoid(jnp.dot(h, w2, precision=hp) + b2)


if __name__ == "__main__":
    # Small shapes consistent with the module: batch=8, input_size=16, hidden=32, output=4.
    B, INPUT_SIZE, HIDDEN, OUTPUT_SIZE = 8, 16, 32, 4

    key = jax.random.PRNGKey(0)
    kx, kp, kx2 = jax.random.split(key, 3)
    x = jax.random.normal(kx, (B, INPUT_SIZE), dtype=jnp.float32)
    w1, b1, w2, b2 = init_params(kp, INPUT_SIZE, HIDDEN, OUTPUT_SIZE)

    forward = jax.jit(shallow_network_forward, static_argnames=("batch_tile",))

    # Tolerance: the TPU MXU may run f32 matmuls via bf16 passes; sigmoid outputs in
    # [0,1] then differ from the full-f32 reference by well under 2e-3.
    TOL = 2e-3

    # --- Tiny-batch fast path (no grid / no pipeline) ---
    out = jax.block_until_ready(forward(x, w1, b1, w2, b2))
    ref = _reference(x, w1, b1, w2, b2)
    assert out.shape == (B, OUTPUT_SIZE)
    assert jnp.allclose(out, ref, atol=TOL), float(jnp.max(jnp.abs(out - ref)))

    # --- Streaming path (batch-tiled pipeline, resident weights, ragged last tile) ---
    B_big = 2176  # 2*1024 + 128: grid of 3 steps with a masked ragged tail
    x_big = jax.random.normal(kx2, (B_big, INPUT_SIZE), dtype=jnp.float32)
    out_big = jax.block_until_ready(forward(x_big, w1, b1, w2, b2, batch_tile=1024))
    ref_big = _reference(x_big, w1, b1, w2, b2)
    assert out_big.shape == (B_big, OUTPUT_SIZE)
    assert jnp.allclose(out_big, ref_big, atol=TOL), float(jnp.max(jnp.abs(out_big - ref_big)))

    print("KERNEL_OK")
</pallas_src>

<mosaic_0001>
module attributes {stable_mosaic.version = 11 : i64} {
  func.func @shallow_network_kernel(%arg0: memref<8x16xf32, #tpu.memory_space<vmem>>, %arg1: memref<16x32xf32, #tpu.memory_space<vmem>>, %arg2: memref<1x32xf32, #tpu.memory_space<vmem>>, %arg3: memref<32x4xf32, #tpu.memory_space<vmem>>, %arg4: memref<1x4xf32, #tpu.memory_space<vmem>>, %arg5: memref<8x4xf32, #tpu.memory_space<vmem>>) attributes {dimension_semantics = [], scalar_prefetch = 0 : i64, scratch_operands = 0 : i64, tpu.core_type = #tpu.core_type<tc>} {
    %c0 = arith.constant 0 : index
    %c0_0 = arith.constant 0 : index
    %0 = vector.load %arg0[%c0, %c0_0] : memref<8x16xf32, #tpu.memory_space<vmem>>, vector<8x16xf32>
    %c0_1 = arith.constant 0 : index
    %c0_2 = arith.constant 0 : index
    %1 = vector.load %arg1[%c0_1, %c0_2] : memref<16x32xf32, #tpu.memory_space<vmem>>, vector<16x32xf32>
    %cst = arith.constant dense<0.000000e+00> : vector<8x32xf32>
    %2 = tpu.matmul %0, %1, %cst {dimension_numbers = #tpu.dot_dimension_numbers<[1], [0], [0], [1], [0, 0, 1, 1], [], []>} : vector<8x16xf32>, vector<16x32xf32>, vector<8x32xf32> -> vector<8x32xf32>
    %c0_3 = arith.constant 0 : index
    %c0_4 = arith.constant 0 : index
    %3 = vector.load %arg2[%c0_3, %c0_4] : memref<1x32xf32, #tpu.memory_space<vmem>>, vector<1x32xf32>
    %4 = vector.broadcast %3 : vector<1x32xf32> to vector<8x32xf32>
    %5 = arith.addf %2, %4 : vector<8x32xf32>
    %cst_5 = arith.constant 0.000000e+00 : f32
    %6 = vector.broadcast %cst_5 : f32 to vector<8x32xf32>
    %7 = arith.maximumf %5, %6 : vector<8x32xf32>
    %c0_6 = arith.constant 0 : index
    %c0_7 = arith.constant 0 : index
    %8 = vector.load %arg3[%c0_6, %c0_7] : memref<32x4xf32, #tpu.memory_space<vmem>>, vector<32x4xf32>
    %cst_8 = arith.constant dense<0.000000e+00> : vector<8x4xf32>
    %9 = tpu.matmul %7, %8, %cst_8 {dimension_numbers = #tpu.dot_dimension_numbers<[1], [0], [0], [1], [0, 0, 1, 1], [], []>} : vector<8x32xf32>, vector<32x4xf32>, vector<8x4xf32> -> vector<8x4xf32>
    %c0_9 = arith.constant 0 : index
    %c0_10 = arith.constant 0 : index
    %10 = vector.load %arg4[%c0_9, %c0_10] : memref<1x4xf32, #tpu.memory_space<vmem>>, vector<1x4xf32>
    %11 = vector.broadcast %10 : vector<1x4xf32> to vector<8x4xf32>
    %12 = arith.addf %9, %11 : vector<8x4xf32>
    %13 = arith.negf %12 : vector<8x4xf32>
    %14 = math.exp %13 : vector<8x4xf32>
    %cst_11 = arith.constant 1.000000e+00 : f32
    %15 = vector.broadcast %cst_11 : f32 to vector<8x4xf32>
    %16 = arith.addf %15, %14 : vector<8x4xf32>
    %17 = arith.divf %15, %16 : vector<8x4xf32>
    %c0_12 = arith.constant 0 : index
    %c0_13 = arith.constant 0 : index
    %18 = vector.load %arg5[%c0_12, %c0_13] : memref<8x4xf32, #tpu.memory_space<vmem>>, vector<8x4xf32>
    tpu.vector_store %arg5[%c0_12, %c0_13], %17 {strides = array<i32>} : memref<8x4xf32, #tpu.memory_space<vmem>>, vector<8x4xf32>,
    return
  }
}

</mosaic_0001>

<llo_original>
// kernel: shallow_network_forward.1
$region0: #{shallow_network_forward.1}
  #allocation0 [shape = 'u32[]', space=smem, size = 0x4, offset = 0x4, fixed_abs, tag = 'smem constant byte address 0x4 - core index']
  #allocation1 [shape = 'u32[72,128]{1,0:T(1,128)}', space=vmem, size = 0x9000, scoped, tag = 'internal scratch']
  %s0 = inlined_call_operand.vmem [shape: f32[8,16], index: 0, kind: input, shape index: {}]
  %s1 = inlined_call_operand.vmem [shape: f32[16,32], index: 1, kind: input, shape index: {}]
  %s2 = inlined_call_operand.vmem [shape: f32[1,32], index: 2, kind: input, shape index: {}]
  %s3 = inlined_call_operand.vmem [shape: f32[32,4], index: 3, kind: input, shape index: {}]
  %s4 = inlined_call_operand.vmem [shape: f32[1,4], index: 4, kind: input, shape index: {}]
  %s5 = inlined_call_operand.vmem [shape: f32[8,4], index: 5, kind: output, shape index: {}]
  %s6 = sld [smem:[#allocation0]]
  $region30: #{shallow_network_forward.1} parent=0
    _
  %s8 = ssub.s32 1, %s6
  %s9 = scalar_select 0, %s8, %s6
  // Predicated region
  $region2: #{shallow_network_forward.1} parent=0 // pred_check
    _
  $region3: #{shallow_network_forward.1} parent=0 // pred_check_branch
    %11 = sbr.rel (0) target = $region5
  $region4: #{shallow_network_forward.1} parent=0 // pred_region
    _
  $region5: #{shallow_network_forward.1} parent=0 // pred_fallthru
    _
  // Predicated region
  $region6: #{shallow_network_forward.1} parent=0 // pred_check
    _
  $region7: #{shallow_network_forward.1} parent=0 // pred_check_branch
    %13 = sbr.rel (0) target = $region9
  $region8: #{shallow_network_forward.1} parent=0 // pred_region
    _
  $region9: #{shallow_network_forward.1} parent=0 // pred_fallthru
    _
  // Predicated region
  $region10: #{shallow_network_forward.1} parent=0 // pred_check
    _
  $region11: #{shallow_network_forward.1} parent=0 // pred_check_branch
    %15 = sbr.rel (0) target = $region13
  $region12: #{shallow_network_forward.1} parent=0 // pred_region
    _
  $region13: #{shallow_network_forward.1} parent=0 // pred_fallthru
    _
  // Predicated region
  $region14: #{shallow_network_forward.1} parent=0 // pred_check
    _
  $region15: #{shallow_network_forward.1} parent=0 // pred_check_branch
    %17 = sbr.rel (0) target = $region17
  $region16: #{shallow_network_forward.1} parent=0 // pred_region
    _
  $region17: #{shallow_network_forward.1} parent=0 // pred_fallthru
    _
  // Predicated region
  $region18: #{shallow_network_forward.1} parent=0 // pred_check
    _
  $region19: #{shallow_network_forward.1} parent=0 // pred_check_branch
    %19 = sbr.rel (0) target = $region21
  $region20: #{shallow_network_forward.1} parent=0 // pred_region
    _
  $region21: #{shallow_network_forward.1} parent=0 // pred_fallthru
    _
  %v20 = vld [vmem:[%s0] sm:$0xff]
  %v21 = vld [vmem:[%s1] sm:$0xff]
  %v22 = vld [vmem:[%s1 + $0x8] sm:$0xff]
  %v23 = vld [vmem:[%s2] sm:$0x1]
  %v25 = vperm.slane %v23, 0
  %vm27 = vcmask 130048
  %v29 = vsel %vm27, %v20, 0
  %31 = vmatpush.msra.mxu0 0.0
  %32 = vmatpush.msra.mxu0 0.0
  %33 = vmatpush.msra.mxu0 0.0
  %34 = vmatpush.msra.mxu0 0.0
  %35 = vmatpush.msra.mxu0 0.0
  %36 = vmatpush.msra.mxu0 0.0
  %37 = vmatpush.msra.mxu0 0.0
  %38 = vmatpush.msra.mxu0 0.0
  %39 = vmatpush.msra.mxu0 0.0
  %40 = vmatpush.msra.mxu0 0.0
  %41 = vmatpush.msra.mxu0 0.0
  %42 = vmatpush.msra.mxu0 0.0
  %43 = vmatpush.msra.mxu0 0.0
  %44 = vmatpush.msra.mxu0 0.0
  %45 = vmatpush.msra.mxu0 %v22
  %46 = vmatpush.msra.mxu0 %v21
  %47 = vmatmul.f32.gmra.mxu0 %v29
  %v48 = vpop.f32.mrf.mxu0
  %v49 = vadd.f32 %v25, %v48
  %50 = vdwg.mxu0
  %v51 = vmax.f32 %v49, 0.0
  %v52 = vld [vmem:[%s3] sm:$0xff]
  %v53 = vld [vmem:[%s3 + $0x8] sm:$0xff]
  %v54 = vld [vmem:[%s3 + $0x10] sm:$0xff]
  %v55 = vld [vmem:[%s3 + $0x18] sm:$0xff]
  %v56 = vld [vmem:[%s4] sm:$0x1]
  %v58 = vperm.slane %v56, 0
  %vm60 = vcmask 261120
  %v62 = vsel %vm60, %v51, 0
  %64 = vmatpush.msra.mxu0 0.0
  %65 = vmatpush.msra.mxu0 0.0
  %66 = vmatpush.msra.mxu0 0.0
  %67 = vmatpush.msra.mxu0 0.0
  %68 = vmatpush.msra.mxu0 0.0
  %69 = vmatpush.msra.mxu0 0.0
  %70 = vmatpush.msra.mxu0 0.0
  %71 = vmatpush.msra.mxu0 0.0
  %72 = vmatpush.msra.mxu0 0.0
  %73 = vmatpush.msra.mxu0 0.0
  %74 = vmatpush.msra.mxu0 0.0
  %75 = vmatpush.msra.mxu0 0.0
  %76 = vmatpush.msra.mxu0 %v55
  %77 = vmatpush.msra.mxu0 %v54
  %78 = vmatpush.msra.mxu0 %v53
  %79 = vmatpush.msra.mxu0 %v52
  %80 = vmatmul.f32.gmra.mxu0 %v62
  %v81 = vpop.f32.mrf.mxu0
  %v82 = vadd.f32 %v58, %v81
  %83 = vdwg.mxu0
  %v84 = vxor.u32 %v82, 2147483648
  %v85 = vmul.f32 %v84, 1.442695
  %v86 = vpow.pop %v85
  %v87 = vadd.f32 %v86, 1.0
  %v88 = vrcp.pop %v87
  %v89 = vmul.f32 %v87, %v88
  %v90 = vsub.f32 1.0, %v89
  %v91 = vmul.f32 %v88, %v90
  %v92 = vadd.f32 %v88, %v91
  %vm93 = vweird.f32 %v87
  %vm94 = vweird.f32 %v88
  %vm95 = vmor %vm93, %vm94
  %v96 = vsel %vm95, %v88, %v92
  %v97 = vand.u32 2147483647, %v87
  %vm98 = vcmp.eq.f32.partialorder %v97, 8.507059e+37
  %v99 = vand.u32 %v87, 2147483648
  %v100 = vor.u32 1.1754944e-38, %v99
  %v101 = vsel %vm98, %v100, %v96
  %v102 = vmul.f32 1.0, %v101
  %vm103 = vcmask 31744
  %104 = vst.msk [vmem:[%s5] sm:$0xff] %vm103, %v102
  // Predicated region
  $region22: #{shallow_network_forward.1} parent=0 // pred_check
    _
  $region23: #{shallow_network_forward.1} parent=0 // pred_check_branch
    %106 = sbr.rel (0) target = $region25
  $region24: #{shallow_network_forward.1} parent=0 // pred_region
    _
  $region25: #{shallow_network_forward.1} parent=0 // pred_fallthru
    _
  // Predicated region
  $region26: #{shallow_network_forward.1} parent=0 // pred_check
    _
  $region27: #{shallow_network_forward.1} parent=0 // pred_check_branch
    %108 = sbr.rel (0) target = $region29
  $region28: #{shallow_network_forward.1} parent=0 // pred_region
    _
  $region29: #{shallow_network_forward.1} parent=0 // pred_fallthru
    _

</llo_original>
